<compile_context>
chip_gen: v7x
topology: tpu7x:2x2x1
jax: 0.10.0
libtpu: 0.0.40
codegen_flags: <defaults>
</compile_context>

<pallas_src>
import math

import jax
import jax.numpy as jnp
from jax.experimental import pallas as pl
from jax.experimental.pallas import tpu as pltpu


def _round_up(x, m):
    return (x + m - 1) // m * m


def _fused_kernel(x_ref, wbd_ref, offset_ref, o_ref):
    # x_ref: (TB, G*I) flattened; wbd_ref: (G*I, G) block-diagonal with BN scale folded in.
    dot = jnp.dot(x_ref[...], wbd_ref[...],
                  preferred_element_type=jnp.float32)          # MXU, f32 accumulate -> (TB, G)
    out = dot + offset_ref[...]                                # fused fc-bias + BN offset
    o_ref[...] = jnp.maximum(out, 0.0).astype(o_ref.dtype)     # ReLU, store


def _pick_tile_and_vmem_limit(B, GI, G, in_itemsize, out_itemsize):
    # Conservative default assumes v7x: 64 MiB physical VMEM per TensorCore.
    vmem_physical = 64 << 20
    try:  # use the real chip's VMEM when queryable (128 MiB on v5e/v6e)
        info = pltpu.get_tpu_info()
        vmem_physical = int(getattr(info, "vmem_capacity_bytes", vmem_physical))
    except Exception:
        pass
    # Scoped limit: ~half of reported physical, clamped so a per-chip (vs per-TC) report on
    # v7x cannot push us past the real per-TC capacity; leaves room for Mosaic internals.
    vmem_limit = int(min(max(vmem_physical // 2, 32 << 20), 64 << 20))
    # Tile-sizing budget is deliberately even more conservative than the scoped limit.
    budget = min(vmem_limit, 32 << 20) // 2
    # Per batch row after lane padding: flattened x row + padded output row; both the x tile
    # and the output tile are double-buffered by the pipeline (default Buffered(2) kept).
    row_bytes = _round_up(GI, 128) * in_itemsize + _round_up(G, 128) * out_itemsize
    tb_vmem = budget // (2 * max(row_bytes, 1))

    pack = max(8, 32 // in_itemsize)          # sublane packing: 8 f32 / 16 bf16 / 32 int8
    tb_vmem = max(pack, (tb_vmem // pack) * pack)

    # Keep at least ~8 grid steps (DMA/compute overlap; both v7x TCs get work) and cap TB at
    # the measured 512-2048 row sweet spot.
    tb_steps = _round_up(max(1, (B + 7) // 8), pack)
    tb = min(tb_vmem, 2048, tb_steps)
    if tb >= B:
        tb = B                                # single full-extent batch block is always legal
    return tb, pack, vmem_limit


def nclass_basic_linear(x, weight, bias, gamma, beta, running_mean, running_var,
                        eps=1e-5, block_batch=None):
    """x: (B, G, I); weight: (G, I, 1); bias: (G, 1); BN params/stats: (G,) -> (B, G, 1)."""
    B, G, I = x.shape
    assert weight.shape == (G, I, 1), weight.shape   # out_features == 1
    assert bias.shape == (G, 1), bias.shape
    GI = G * I

    # Fold fc bias + BatchNorm (eval / running-stats form) into per-group scale/offset.
    inv_std = jax.lax.rsqrt(running_var.astype(jnp.float32) + jnp.float32(eps))   # (G,)
    scale = gamma.astype(jnp.float32) * inv_std                                   # (G,)
    offset = ((bias[:, 0].astype(jnp.float32) - running_mean.astype(jnp.float32)) * scale
              + beta.astype(jnp.float32))                                         # (G,)

    # Block-diagonal MXU weight with the BN scale folded in:
    #   wbd[g*I + i, h] = w[g, i] * scale[g]  if h == g else 0
    w_scaled = weight[..., 0].astype(jnp.float32) * scale[:, None]                # (G, I)
    eye = jnp.eye(G, dtype=jnp.float32)
    wbd = (w_scaled[:, :, None] * eye[:, None, :]).reshape(GI, G).astype(x.dtype)

    x2d = x.reshape(B, GI)                    # contiguous flatten -> lane-dense (B, G*I) slab
    offset2d = offset.reshape(1, G)

    tb, pack, vmem_limit = _pick_tile_and_vmem_limit(
        B, GI, G, x.dtype.itemsize, x.dtype.itemsize)
    if block_batch is not None:
        tb = B if block_batch >= B else max(pack, (block_batch // pack) * pack)

    grid = (pl.cdiv(B, tb),)

    out2d = pl.pallas_call(
        _fused_kernel,
        out_shape=jax.ShapeDtypeStruct((B, G), x.dtype),
        grid_spec=pltpu.PrefetchScalarGridSpec(
            num_scalar_prefetch=0,
            grid=grid,
            in_specs=[
                # x: tile batch only; flattened feature axis is full extent -> contiguous DMA.
                pl.BlockSpec((tb, GI), lambda i: (i, 0)),
                # block-diagonal weight / offset: constant index_map -> resident across steps.
                pl.BlockSpec((GI, G), lambda i: (0, 0)),
                pl.BlockSpec((1, G), lambda i: (0, 0)),
            ],
            # 2D (TB, G) output tile (trailing size-1 dim dropped); reshape outside.
            out_specs=pl.BlockSpec((tb, G), lambda i: (i, 0)),
        ),
        compiler_params=pltpu.CompilerParams(
            # "parallel" is safe on all generations; CORE_PARALLEL is a further v7x option.
            dimension_semantics=("parallel",),
            vmem_limit_bytes=vmem_limit,
        ),
    )(x2d, wbd, offset2d)

    return out2d[:, :, None]                  # (B, G, 1), matching the PyTorch module


def _reference(x, weight, bias, gamma, beta, mean, var, eps):
    # Pure-JAX reference: grouped linear -> BatchNorm1d (eval) -> ReLU, all in f32.
    xf = x.astype(jnp.float32)
    y = jnp.einsum("bgi,gio->bgo", xf, weight.astype(jnp.float32))
    y = y + bias.astype(jnp.float32)[None, :, :]                                  # (B, G, 1)
    z = (y - mean[None, :, None]) * jax.lax.rsqrt(var[None, :, None] + jnp.float32(eps))
    z = z * gamma[None, :, None] + beta[None, :, None]
    return jnp.maximum(z, 0.0)


if __name__ == "__main__":
    B, n_classes, class_channels = 20, 4, 32   # B chosen NOT a multiple of the tile size

    key = jax.random.PRNGKey(0)
    kx, kw, kb, kg, kbt, km, kv = jax.random.split(key, 7)

    # Deterministic params mirroring reset_parameters(): uniform(-stdv, stdv), stdv = 1/sqrt(I).
    stdv = 1.0 / math.sqrt(class_channels)
    x = jax.random.normal(kx, (B, n_classes, class_channels), dtype=jnp.float32)
    weight = jax.random.uniform(kw, (n_classes, class_channels, 1),
                                minval=-stdv, maxval=stdv, dtype=jnp.float32)
    bias = jax.random.uniform(kb, (n_classes, 1), minval=-stdv, maxval=stdv, dtype=jnp.float32)
    # BatchNorm1d(n_classes) affine params + running stats (eval-mode semantics).
    gamma = 1.0 + 0.1 * jax.random.normal(kg, (n_classes,), dtype=jnp.float32)
    beta = 0.1 * jax.random.normal(kbt, (n_classes,), dtype=jnp.float32)
    running_mean = 0.1 * jax.random.normal(km, (n_classes,), dtype=jnp.float32)
    running_var = jax.random.uniform(kv, (n_classes,), minval=0.5, maxval=1.5, dtype=jnp.float32)
    eps = 1e-5

    ref = _reference(x, weight, bias, gamma, beta, running_mean, running_var, eps)

    # 1) Auto tile (tb=8 here -> 3 grid steps, last block partial).
    out_auto = jax.block_until_ready(
        nclass_basic_linear(x, weight, bias, gamma, beta, running_mean, running_var, eps))
    assert out_auto.shape == (B, n_classes, 1)
    assert jnp.allclose(out_auto, ref, atol=1e-4, rtol=1e-4)

    # 2) Explicit tile that does not divide B (partial last block masking check).
    out_tiled = jax.block_until_ready(
        nclass_basic_linear(x, weight, bias, gamma, beta, running_mean, running_var, eps,
                            block_batch=16))
    assert jnp.allclose(out_tiled, ref, atol=1e-4, rtol=1e-4)

    # 3) bf16 input path (MXU handles bf16 natively on all generations); looser tolerance.
    out_bf16 = jax.block_until_ready(
        nclass_basic_linear(x.astype(jnp.bfloat16), weight, bias, gamma, beta,
                            running_mean, running_var, eps))
    assert out_bf16.dtype == jnp.bfloat16
    assert jnp.allclose(out_bf16.astype(jnp.float32), ref, atol=1e-1, rtol=1e-1)

    print("KERNEL_OK")
</pallas_src>

<mosaic_0001>
module attributes {stable_mosaic.version = 11 : i64} {
  func.func @_fused_kernel(%arg0: i32, %arg1: memref<8x128xf32, #tpu.memory_space<vmem>>, %arg2: memref<128x4xf32, #tpu.memory_space<vmem>>, %arg3: memref<1x4xf32, #tpu.memory_space<vmem>>, %arg4: memref<8x4xf32, #tpu.memory_space<vmem>>) attributes {dimension_semantics = [#tpu.dimension_semantics<parallel>], iteration_bounds = array<i64: 3>, scalar_prefetch = 0 : i64, scratch_operands = 0 : i64, tpu.core_type = #tpu.core_type<tc>, window_params = [{transform_indices = @transform_0, window_bounds = array<i64: 8, 128>}, {pipeline_mode = #tpu.pipeline_mode<synchronous>, transform_indices = @transform_1, window_bounds = array<i64: 128, 4>}, {pipeline_mode = #tpu.pipeline_mode<synchronous>, transform_indices = @transform_2, window_bounds = array<i64: 1, 4>}, {transform_indices = @transform_3, window_bounds = array<i64: 8, 4>}]} {
    %c0 = arith.constant 0 : index
    %c0_0 = arith.constant 0 : index
    %0 = vector.load %arg1[%c0, %c0_0] : memref<8x128xf32, #tpu.memory_space<vmem>>, vector<8x128xf32>
    %c0_1 = arith.constant 0 : index
    %c0_2 = arith.constant 0 : index
    %1 = vector.load %arg2[%c0_1, %c0_2] : memref<128x4xf32, #tpu.memory_space<vmem>>, vector<128x4xf32>
    %cst = arith.constant dense<0.000000e+00> : vector<8x4xf32>
    %2 = tpu.matmul %0, %1, %cst {dimension_numbers = #tpu.dot_dimension_numbers<[1], [0], [0], [1], [0, 0, 1, 1], [], []>} : vector<8x128xf32>, vector<128x4xf32>, vector<8x4xf32> -> vector<8x4xf32>
    %c0_3 = arith.constant 0 : index
    %c0_4 = arith.constant 0 : index
    %3 = vector.load %arg3[%c0_3, %c0_4] : memref<1x4xf32, #tpu.memory_space<vmem>>, vector<1x4xf32>
    %4 = vector.broadcast %3 : vector<1x4xf32> to vector<8x4xf32>
    %5 = arith.addf %2, %4 : vector<8x4xf32>
    %cst_5 = arith.constant 0.000000e+00 : f32
    %6 = vector.broadcast %cst_5 : f32 to vector<8x4xf32>
    %7 = arith.maximumf %5, %6 : vector<8x4xf32>
    %c0_6 = arith.constant 0 : index
    %c0_7 = arith.constant 0 : index
    %8 = vector.load %arg4[%c0_6, %c0_7] : memref<8x4xf32, #tpu.memory_space<vmem>>, vector<8x4xf32>
    tpu.vector_store %arg4[%c0_6, %c0_7], %7 {strides = array<i32>} : memref<8x4xf32, #tpu.memory_space<vmem>>, vector<8x4xf32>,
    return
  }
  func.func @transform_0(%arg0: i32) -> (i32, i32) {
    %c0_i32 = arith.constant 0 : i32
    %c0_i32_0 = arith.constant 0 : i32
    return %arg0, %c0_i32 : i32, i32
  }
  func.func @transform_1(%arg0: i32) -> (i32, i32) {
    %c0_i32 = arith.constant 0 : i32
    %c0_i32_0 = arith.constant 0 : i32
    %c0_i32_1 = arith.constant 0 : i32
    return %c0_i32, %c0_i32_0 : i32, i32
  }
  func.func @transform_2(%arg0: i32) -> (i32, i32) {
    %c0_i32 = arith.constant 0 : i32
    %c0_i32_0 = arith.constant 0 : i32
    %c0_i32_1 = arith.constant 0 : i32
    return %c0_i32, %c0_i32_0 : i32, i32
  }
  func.func @transform_3(%arg0: i32) -> (i32, i32) {
    %c0_i32 = arith.constant 0 : i32
    %c0_i32_0 = arith.constant 0 : i32
    return %arg0, %c0_i32 : i32, i32
  }
}

</mosaic_0001>

<llo_original>
// kernel: tpu_custom_call.1
$region0: #{tpu_custom_call.1}
  #allocation0 [shape = 'u32[]', space=smem, size = 0x4, offset = 0x4, fixed_abs, tag = 'smem constant byte address 0x4 - core index']
  #allocation1 [shape = 'u32[144,128]{1,0:T(1,128)}', space=vmem, size = 0x12000, scoped, tag = 'internal scratch']
  %s0 = inlined_call_operand.vmem [shape: f32[20,128], index: 0, kind: input, shape index: {}]
  %s1 = inlined_call_operand.vmem [shape: f32[128,4], index: 1, kind: input, shape index: {}]
  %s2 = inlined_call_operand.vmem [shape: f32[1,4], index: 2, kind: input, shape index: {}]
  %s3 = inlined_call_operand.vmem [shape: f32[20,4], index: 3, kind: output, shape index: {}]
  %s4 = sld [smem:[#allocation0]]
  $region45: #{tpu_custom_call.1} parent=0
    _
  %s6 = ssub.s32 1, %s4
  %s7 = scalar_select 0, %s6, %s4
  loop: start=0, step=1, limit=5
  $region2: #{tpu_custom_call.1} parent=0 // loop_pre_header
    _
  $region3: #{tpu_custom_call.1} parent=0 // loop_header
    %s9 = sphi 0, %s13
    %p10 = scmp.ge.s32.totalorder %s9, 5
    %s19 = sphi 0, %s21
    %s22 = sphi 0, %s19
    %s23 = sphi 0, %s22
    %s39 = sphi 0, %s23
    %s43 = sphi 0, %s43
    %s45 = sphi 0, %s43
    %s46 = sphi 0, %s45
    %s60 = sphi 0, %s46
    %s64 = sphi 0, %s64
    %s66 = sphi 0, %s64
    %s67 = sphi 0, %s66
    %s81 = sphi 0, %s67
    %s87 = sphi 0, %s89
    %s90 = sphi 0, %s87
    %s91 = sphi 0, %s90
    %s107 = sphi 0, %s91
  $region4: #{tpu_custom_call.1} parent=0 // loop_header_branch
    %12 = sbr.rel (%p10) target = $region8
  $region5: #{tpu_custom_call.1} parent=0 // loop_body
    %s14 = ssub.s32 %s9, 1
    %s15 = ssub.s32 %s9, 2
    %s16 = sadd.s32 %s9, 1
    %s17 = ssub.s32 %s9, %s16
    %p18 = scmp.eq.s32.totalorder %s17, 0
    %s20 = sadd.s32 %s19, 1
    %s21 = scalar_select %p18, %s19, %s20
    %p24 = pneg %p18
    %p25 = scmp.eq.s32.totalorder %s9, 2
    %p26 = por %p24, %p25
    %p27 = scmp.ne.s32.totalorder %s19, %s22
    %p28 = scmp.eq.s32.totalorder %s9, 0
    %p29 = por %p27, %p28
    %p30 = scmp.ne.s32.totalorder %s19, %s22
    %p31 = scmp.eq.s32.totalorder %s14, 2
    %p32 = por %p30, %p31
    %p33 = scmp.ne.s32.totalorder %s22, %s23
    %p34 = scmp.eq.s32.totalorder %s14, 0
    %p35 = por %p33, %p34
    %p36 = scmp.ne.s32.totalorder %s22, %s23
    %p37 = scmp.eq.s32.totalorder %s15, 2
    %p38 = por %p36, %p37
    %p40 = scmp.ne.s32.totalorder %s23, %s39
    %p41 = scmp.eq.s32.totalorder %s15, 0
    %p42 = por %p40, %p41
    %s44 = sadd.s32 %s43, 1
    %p47 = scmp.eq.s32.totalorder %s9, 2
    %p48 = scmp.ne.s32.totalorder %s43, %s45
    %p49 = scmp.eq.s32.totalorder %s9, 0
    %p50 = por %p48, %p49
    %p51 = scmp.ne.s32.totalorder %s43, %s45
    %p52 = scmp.eq.s32.totalorder %s14, 2
    %p53 = por %p51, %p52
    %p54 = scmp.ne.s32.totalorder %s45, %s46
    %p55 = scmp.eq.s32.totalorder %s14, 0
    %p56 = por %p54, %p55
    %p57 = scmp.ne.s32.totalorder %s45, %s46
    %p58 = scmp.eq.s32.totalorder %s15, 2
    %p59 = por %p57, %p58
    %p61 = scmp.ne.s32.totalorder %s46, %s60
    %p62 = scmp.eq.s32.totalorder %s15, 0
    %p63 = por %p61, %p62
    %s65 = sadd.s32 %s64, 1
    %p68 = scmp.eq.s32.totalorder %s9, 2
    %p69 = scmp.ne.s32.totalorder %s64, %s66
    %p70 = scmp.eq.s32.totalorder %s9, 0
    %p71 = por %p69, %p70
    %p72 = scmp.ne.s32.totalorder %s64, %s66
    %p73 = scmp.eq.s32.totalorder %s14, 2
    %p74 = por %p72, %p73
    %p75 = scmp.ne.s32.totalorder %s66, %s67
    %p76 = scmp.eq.s32.totalorder %s14, 0
    %p77 = por %p75, %p76
    %p78 = scmp.ne.s32.totalorder %s66, %s67
    %p79 = scmp.eq.s32.totalorder %s15, 2
    %p80 = por %p78, %p79
    %p82 = scmp.ne.s32.totalorder %s67, %s81
    %p83 = scmp.eq.s32.totalorder %s15, 0
    %p84 = por %p82, %p83
    %s85 = ssub.s32 %s9, %s16
    %p86 = scmp.eq.s32.totalorder %s85, 0
    %s88 = sadd.s32 %s87, 1
    %s89 = scalar_select %p86, %s87, %s88
    %p92 = pneg %p86
    %p93 = scmp.eq.s32.totalorder %s9, 2
    %p94 = por %p92, %p93
    %p95 = scmp.ne.s32.totalorder %s87, %s90
    %p96 = scmp.eq.s32.totalorder %s9, 0
    %p97 = por %p95, %p96
    %p98 = scmp.ne.s32.totalorder %s87, %s90
    %p99 = scmp.eq.s32.totalorder %s14, 2
    %p100 = por %p98, %p99
    %p101 = scmp.ne.s32.totalorder %s90, %s91
    %p102 = scmp.eq.s32.totalorder %s14, 0
    %p103 = por %p101, %p102
    %p104 = scmp.ne.s32.totalorder %s90, %s91
    %p105 = scmp.eq.s32.totalorder %s15, 2
    %p106 = por %p104, %p105
    %p108 = scmp.ne.s32.totalorder %s91, %s107
    %p109 = scmp.eq.s32.totalorder %s15, 0
    %p110 = por %p108, %p109
    %p111 = scmp.le.s32.totalorder 1, %s9
    %p112 = scmp.lt.s32.totalorder %s9, 4
    %p113 = pnand %p111, %p112
    %p114 = pneg %p113
    // Predicated region
    $region9: #{tpu_custom_call.1} parent=5 // pred_check
      _
    $region10: #{tpu_custom_call.1} parent=5 // pred_check_branch
      %116 = sbr.rel (%p113) target = $region12
    $region11: #{tpu_custom_call.1} parent=5 // pred_region
      %s117 = ssub.s32 %s9, 1
      // Predicated region
      $region13: #{tpu_custom_call.1} parent=11 // pred_check
        %p118 = pneg %p56
      $region14: #{tpu_custom_call.1} parent=11 // pred_check_branch
        %120 = sbr.rel (%p118) target = $region16
      $region15: #{tpu_custom_call.1} parent=11 // pred_region
        _
      $region16: #{tpu_custom_call.1} parent=11 // pred_fallthru
        _
      // Predicated region
      $region17: #{tpu_custom_call.1} parent=11 // pred_check
        %p121 = pneg %p77
      $region18: #{tpu_custom_call.1} parent=11 // pred_check_branch
        %123 = sbr.rel (%p121) target = $region20
      $region19: #{tpu_custom_call.1} parent=11 // pred_region
        _
      $region20: #{tpu_custom_call.1} parent=11 // pred_fallthru
        _
    $region12: #{tpu_custom_call.1} parent=5 // pred_fallthru
      _
    %p124 = scmp.lt.s32.totalorder %s9, 3
    // Predicated region
    $region21: #{tpu_custom_call.1} parent=5 // pred_check
      %p125 = pneg %p124
    $region22: #{tpu_custom_call.1} parent=5 // pred_check_branch
      %127 = sbr.rel (%p125) target = $region24
    $region23: #{tpu_custom_call.1} parent=5 // pred_region
      // Predicated region
      $region25: #{tpu_custom_call.1} parent=23 // pred_check
        %p128 = pneg %p29
      $region26: #{tpu_custom_call.1} parent=23 // pred_check_branch
        %130 = sbr.rel (%p128) target = $region28
      $region27: #{tpu_custom_call.1} parent=23 // pred_region
        %p131 = scmp.lt.s32.totalorder %s9, 2
        %s132 = scalar_select %p131, %s9, 2
        %s133 = smul.addr %s132, 8
        %s134 = scalar_lea.vmem %s0, %s133
      $region28: #{tpu_custom_call.1} parent=23 // pred_fallthru
        _
    $region24: #{tpu_custom_call.1} parent=5 // pred_fallthru
      _
    %p135 = scmp.le.s32.totalorder 1, %s9
    %p136 = scmp.lt.s32.totalorder %s9, 4
    %p137 = pnand %p135, %p136
    %p138 = pneg %p137
    // Predicated region
    $region29: #{tpu_custom_call.1} parent=5 // pred_check
      _
    $region30: #{tpu_custom_call.1} parent=5 // pred_check_branch
      %140 = sbr.rel (%p137) target = $region32
    $region31: #{tpu_custom_call.1} parent=5 // pred_region
      %s141 = ssub.s32 %s9, 1
      %p142 = scmp.lt.s32.totalorder %s14, 2
      %s143 = scalar_select %p142, %s14, 2
      %s144 = smul.addr %s143, 8
      %s145 = scalar_lea.vmem %s0, %s144
      %p146 = pneg %p35
      %p147 = pneg %p32
      %p148 = pneg %p56
      %p149 = pneg %p53
      %p150 = pneg %p77
      %p151 = pneg %p74
      %p152 = pneg %p103
      %p153 = pneg %p100
      %p154 = scmp.lt.s32.totalorder %s14, 2
      %s155 = scalar_select %p154, %s14, 2
      %s156 = smul.addr %s155, 8
      %s157 = scalar_lea.vmem %s3, %s156
      %p158 = scmp.lt.s32.totalorder %s14, 2
      %s159 = scalar_select %p158, %s14, 2
      %s160 = smul.addr %s159, 8
      %s161 = scalar_lea.vmem %s0, %s160
      %p162 = scmp.lt.s32.totalorder %s14, 2
      %s163 = scalar_select %p162, %s14, 2
      %s164 = smul.addr %s163, 8
      %s165 = scalar_lea.vmem %s3, %s164
      %v166 = vld [vmem:[%s161] sm:$0xff]
      %v167 = vld [vmem:[%s1] sm:$0xff]
      %v168 = vld [vmem:[%s1 + $0x8] sm:$0xff]
      %v169 = vld [vmem:[%s1 + $0x10] sm:$0xff]
      %v170 = vld [vmem:[%s1 + $0x18] sm:$0xff]
      %v171 = vld [vmem:[%s1 + $0x20] sm:$0xff]
      %v172 = vld [vmem:[%s1 + $0x28] sm:$0xff]
      %v173 = vld [vmem:[%s1 + $0x30] sm:$0xff]
      %v174 = vld [vmem:[%s1 + $0x38] sm:$0xff]
      %v175 = vld [vmem:[%s1 + $0x40] sm:$0xff]
      %v176 = vld [vmem:[%s1 + $0x48] sm:$0xff]
      %v177 = vld [vmem:[%s1 + $0x50] sm:$0xff]
      %v178 = vld [vmem:[%s1 + $0x58] sm:$0xff]
      %v179 = vld [vmem:[%s1 + $0x60] sm:$0xff]
      %v180 = vld [vmem:[%s1 + $0x68] sm:$0xff]
      %v181 = vld [vmem:[%s1 + $0x70] sm:$0xff]
      %v182 = vld [vmem:[%s1 + $0x78] sm:$0xff]
      %v183 = vld [vmem:[%s2] sm:$0x1]
      %v185 = vlaneseq
      %v186 = vshrl.u32 %v185, 7
      %v187 = vsub.s32 0, %v186
      %v188 = vrot.slane %v183, %v187
      %190 = vmatprep.subr.mxu0 0.0
      %191 = vmatpush1.msra.mxu0 %v167
      %192 = vmatprep.subr.mxu0 0.0
      %193 = vmatpush1.msra.mxu0 %v168
      %194 = vmatprep.subr.mxu0 0.0
      %195 = vmatpush1.msra.mxu0 %v169
      %196 = vmatprep.subr.mxu0 0.0
      %197 = vmatpush1.msra.mxu0 %v170
      %198 = vmatprep.subr.mxu0 0.0
      %199 = vmatpush1.msra.mxu0 %v171
      %200 = vmatprep.subr.mxu0 0.0
      %201 = vmatpush1.msra.mxu0 %v172
      %202 = vmatprep.subr.mxu0 0.0
      %203 = vmatpush1.msra.mxu0 %v173
      %204 = vmatprep.subr.mxu0 0.0
      %205 = vmatpush1.msra.mxu0 %v174
      %206 = vmatprep.subr.mxu0 0.0
      %207 = vmatpush1.msra.mxu0 %v175
      %208 = vmatprep.subr.mxu0 0.0
      %209 = vmatpush1.msra.mxu0 %v176
      %210 = vmatprep.subr.mxu0 0.0
      %211 = vmatpush1.msra.mxu0 %v177
      %212 = vmatprep.subr.mxu0 0.0
      %213 = vmatpush1.msra.mxu0 %v178
      %214 = vmatprep.subr.mxu0 0.0
      %215 = vmatpush1.msra.mxu0 %v179
      %216 = vmatprep.subr.mxu0 0.0
      %217 = vmatpush1.msra.mxu0 %v180
      %218 = vmatprep.subr.mxu0 0.0
      %219 = vmatpush1.msra.mxu0 %v181
      %220 = vmatprep.subr.mxu0 0.0
      %221 = vmatpush1.msra.mxu0 %v182
      %222 = vmatprep.subr.mxu0 0.0
      %223 = vmatpush1.msra.mxu0 0.0
      %224 = vmatprep.subr.mxu0 0.0
      %225 = vmatpush1.msra.mxu0 0.0
      %226 = vmatprep.subr.mxu0 0.0
      %227 = vmatpush1.msra.mxu0 0.0
      %228 = vmatprep.subr.mxu0 0.0
      %229 = vmatpush1.msra.mxu0 0.0
      %230 = vmatprep.subr.mxu0 0.0
      %231 = vmatpush1.msra.mxu0 0.0
      %232 = vmatprep.subr.mxu0 0.0
      %233 = vmatpush1.msra.mxu0 0.0
      %234 = vmatprep.subr.mxu0 0.0
      %235 = vmatpush1.msra.mxu0 0.0
      %236 = vmatprep.subr.mxu0 0.0
      %237 = vmatpush1.msra.mxu0 0.0
      %238 = vmatprep.subr.mxu0 0.0
      %239 = vmatpush1.msra.mxu0 0.0
      %240 = vmatprep.subr.mxu0 0.0
      %241 = vmatpush1.msra.mxu0 0.0
      %242 = vmatprep.subr.mxu0 0.0
      %243 = vmatpush1.msra.mxu0 0.0
      %244 = vmatprep.subr.mxu0 0.0
      %245 = vmatpush1.msra.mxu0 0.0
      %246 = vmatprep.subr.mxu0 0.0
      %247 = vmatpush1.msra.mxu0 0.0
      %248 = vmatprep.subr.mxu0 0.0
      %249 = vmatpush1.msra.mxu0 0.0
      %250 = vmatprep.subr.mxu0 0.0
      %251 = vmatpush1.msra.mxu0 0.0
      %252 = vmatprep.subr.mxu0 0.0
      %253 = vmatpush1.msra.mxu0 0.0
      %254 = vmatprep.mubr.f32.mxu0 0.0
      %255 = vmatmul.mubr.f32.gmra.mrb[0].mxu0 %v166
      %v256 = vpop.f32.mrb[0].mxu0
      %v257 = vadd.f32 %v188, %v256
      %v258 = vpop.f32.mrb[0].mxu0
      %259 = vdwg.mxu0
      %v260 = vmax.f32 %v257, 0.0
      %vm261 = vcmask 31744
      %262 = vst.msk [vmem:[%s165] sm:$0xff] %vm261, %v260
      %p263 = scmp.lt.s32.totalorder %s14, 2
      %s264 = scalar_select %p263, %s14, 2
      %s265 = smul.addr %s264, 8
      %s266 = scalar_lea.vmem %s3, %s265
      // Predicated region
      $region33: #{tpu_custom_call.1} parent=31 // pred_check
        %p267 = pneg %p100
      $region34: #{tpu_custom_call.1} parent=31 // pred_check_branch
        %269 = sbr.rel (%p267) target = $region36
      $region35: #{tpu_custom_call.1} parent=31 // pred_region
        _
      $region36: #{tpu_custom_call.1} parent=31 // pred_fallthru
        _
    $region32: #{tpu_custom_call.1} parent=5 // pred_fallthru
      _
    %p270 = scmp.le.s32.totalorder 2, %s9
    // Predicated region
    $region37: #{tpu_custom_call.1} parent=5 // pred_check
      %p271 = pneg %p270
    $region38: #{tpu_custom_call.1} parent=5 // pred_check_branch
      %273 = sbr.rel (%p271) target = $region40
    $region39: #{tpu_custom_call.1} parent=5 // pred_region
      %s274 = ssub.s32 %s9, 2
      // Predicated region
      $region41: #{tpu_custom_call.1} parent=39 // pred_check
        %p275 = pneg %p106
      $region42: #{tpu_custom_call.1} parent=39 // pred_check_branch
        %277 = sbr.rel (%p275) target = $region44
      $region43: #{tpu_custom_call.1} parent=39 // pred_region
        %p278 = scmp.lt.s32.totalorder %s15, 2
        %s279 = scalar_select %p278, %s15, 2
        %s280 = smul.addr %s279, 8
        %s281 = scalar_lea.vmem %s3, %s280
      $region44: #{tpu_custom_call.1} parent=39 // pred_fallthru
        _
    $region40: #{tpu_custom_call.1} parent=5 // pred_fallthru
      _
  $region6: #{tpu_custom_call.1} parent=0 // loop_footer
    %s13 = sadd.s32 1, %s9
  $region7: #{tpu_custom_call.1} parent=0 // loop_footer_branch
    %8 = sbr.rel target = $region3
  $region8: #{tpu_custom_call.1} parent=0 // loop_exit
    _

</llo_original>
